<compile_context>
chip_gen: v7x
topology: tpu7x:2x2x1
jax: 0.10.0
libtpu: 0.0.40
codegen_flags: <defaults>
</compile_context>

<pallas_src>
import jax
import jax.numpy as jnp
from jax.experimental import pallas as pl
from jax.experimental.pallas import tpu as pltpu

_LANE = 128


def _round_up(x: int, m: int) -> int:
    return ((x + m - 1) // m) * m


def _make_reg_loss_kernel(lambda_xy: float, lambda_wh: float):
    """Masked xy-MSE + sqrt-wh-MSE reduction over a lane-dense [8, T] slab."""

    def kernel(slab_ref, out_ref, acc_ref):
        pid = pl.program_id(0)

        @pl.when(pid == 0)
        def _init():
            acc_ref[0, 0] = 0.0   # weighted squared-error sum
            acc_ref[0, 1] = 0.0   # number of non-ignored boxes

        blk = slab_ref[...].astype(jnp.float32)        # [8, T]
        pred = jnp.abs(blk[0:4, :])                    # |pred| rows: x, y, w, h
        tgt = blk[4:8, :]                              # target rows: x, y, w, h

        # Non-ignore mask: target x != 2.0 (padding lanes carry the sentinel).
        # NOTE: exact-float compare to 2.0 mirrors the PyTorch reference.
        mask = tgt[0:1, :] != 2.0                      # [1, T]

        d_xy = pred[0:2, :] - tgt[0:2, :]
        sq_xy = jnp.where(mask, d_xy * d_xy, 0.0)
        d_wh = jnp.sqrt(pred[2:4, :]) - jnp.sqrt(tgt[2:4, :])
        sq_wh = jnp.where(mask, d_wh * d_wh, 0.0)

        partial = lambda_xy * jnp.sum(sq_xy) + lambda_wh * jnp.sum(sq_wh)
        count = jnp.sum(mask.astype(jnp.float32))

        acc_ref[0, 0] += partial
        acc_ref[0, 1] += count

        @pl.when(pid == pl.num_programs(0) - 1)
        def _finalize():
            out_ref[0, 0] = acc_ref[0, 0]
            out_ref[0, 1] = acc_ref[0, 1]

    return kernel


def reg_loss(pred, target, *, reduction="sum", pretrain=False,
             lambda_xy=1.0, lambda_wh=1.0, tile_lanes=8192):
    """Pallas TPU RegLoss.forward (clip=False; `refine` unused in forward).

    pred, target: [num_boxes, 4]. Returns (loss, 0) like the PyTorch module.
    """
    pred = jnp.asarray(pred)
    target = jnp.asarray(target)
    assert pred.shape == target.shape and pred.ndim == 2 and pred.shape[1] == 4
    assert reduction in ("sum", "mean"), f"unsupported reduction {reduction!r}"
    assert tile_lanes % _LANE == 0

    if pretrain:
        # Odd-row selection wrapper-side (free strided slice) instead of an
        # in-kernel iota/%2 parity mask.
        pred_sel = pred[1::2]
        tgt_sel = target[1::2]
    else:
        # Rows from the first row containing any 2.0 onwards are ignored.
        # Encode that per-row mask into the target-x channel via the 2.0
        # sentinel so the kernel's single `target_x != 2.0` test covers both
        # modes (a non-ignored row can never legitimately carry a 2.0 here).
        has_two = jnp.any(target == 2.0, axis=1)
        ignored = jnp.cumsum(has_two.astype(jnp.int32)) > 0
        pred_sel = pred
        tgt_sel = target.at[:, 0].set(
            jnp.where(ignored, jnp.asarray(2.0, target.dtype), target[:, 0]))

    num_sel = pred_sel.shape[0]
    assert num_sel > 0, "RegLoss needs at least one (selected) box"

    # Lane-dense slab: [8, M]; rows 0-3 pred, rows 4-7 target, boxes on lanes.
    dtype = jnp.promote_types(pred_sel.dtype, tgt_sel.dtype)
    slab = jnp.concatenate(
        [pred_sel.astype(dtype).T, tgt_sel.astype(dtype).T], axis=0)

    # Pad lanes so the tile divides the padded width; padded boxes carry the
    # ignore sentinel in the target-x row so they never pollute the sum.
    tile = min(tile_lanes, _round_up(num_sel, _LANE))
    padded = _round_up(num_sel, tile)
    pad = padded - num_sel
    if pad:
        pad_block = jnp.zeros((8, pad), dtype)
        pad_block = pad_block.at[4, :].set(jnp.asarray(2.0, dtype))
        slab = jnp.concatenate([slab, pad_block], axis=1)

    grid = (padded // tile,)
    out = pl.pallas_call(
        _make_reg_loss_kernel(float(lambda_xy), float(lambda_wh)),
        out_shape=jax.ShapeDtypeStruct((1, 2), jnp.float32),
        grid_spec=pltpu.PrefetchScalarGridSpec(
            num_scalar_prefetch=0,
            grid=grid,
            in_specs=[pl.BlockSpec((8, tile), lambda i: (0, i))],
            out_specs=pl.BlockSpec((1, 2), lambda i: (0, 0),
                                   memory_space=pltpu.MemorySpace.SMEM),
            scratch_shapes=[pltpu.SMEM((1, 2), jnp.float32)],
        ),
        compiler_params=pltpu.CompilerParams(
            dimension_semantics=("arbitrary",)),
    )(slab)

    loss_sum = out[0, 0]
    if reduction == "mean":
        return loss_sum / out[0, 1], 0
    return loss_sum, 0


def _reference_reg_loss(pred, target, *, reduction="sum", pretrain=False,
                        lambda_xy=1.0, lambda_wh=1.0):
    """Pure-JAX mirror of the PyTorch RegLoss.forward (clip=False)."""
    pred = jnp.abs(pred)
    if pretrain:
        p = pred[1::2]
        t = target[1::2]
        mask = t[:, 0] != 2.0
    else:
        has_two = jnp.any(target == 2.0, axis=1)
        mask = ~(jnp.cumsum(has_two.astype(jnp.int32)) > 0)
        p = pred
        t = target
    m = mask[:, None]
    xy = jnp.sum(jnp.where(m, (p[:, 0:2] - t[:, 0:2]) ** 2, 0.0))
    wh = jnp.sum(jnp.where(m, (jnp.sqrt(p[:, 2:4]) - jnp.sqrt(t[:, 2:4])) ** 2,
                           0.0))
    loss = lambda_xy * xy + lambda_wh * wh
    if reduction == "mean":
        loss = loss / jnp.sum(mask)
    return loss


if __name__ == "__main__":
    key = jax.random.PRNGKey(0)
    k1, k2 = jax.random.split(key)

    num_boxes = 16
    pred = jax.random.normal(k1, (num_boxes, 4), dtype=jnp.float32)
    target = jax.random.uniform(k2, (num_boxes, 4), dtype=jnp.float32,
                                minval=0.05, maxval=0.95)

    # pretrain branch: mark two odd-indexed boxes as "ignore" (target x == 2.0).
    target_pre = target.at[3, 0].set(2.0).at[7, 0].set(2.0)
    loss_pre, _ = reg_loss(pred, target_pre, reduction="sum", pretrain=True,
                           lambda_xy=1.0, lambda_wh=0.5)
    loss_pre = jax.block_until_ready(loss_pre)
    ref_pre = _reference_reg_loss(pred, target_pre, reduction="sum",
                                  pretrain=True, lambda_xy=1.0, lambda_wh=0.5)
    assert jnp.allclose(loss_pre, ref_pre, rtol=1e-5, atol=1e-5), (loss_pre, ref_pre)

    # default branch (pretrain=False): rows 10.. are ignored (first 2.0 in row 10).
    target_def = target.at[10, 1].set(2.0)
    loss_def, _ = reg_loss(pred, target_def, reduction="sum", pretrain=False)
    loss_def = jax.block_until_ready(loss_def)
    ref_def = _reference_reg_loss(pred, target_def, reduction="sum",
                                  pretrain=False)
    assert jnp.allclose(loss_def, ref_def, rtol=1e-5, atol=1e-5), (loss_def, ref_def)

    # 'mean' reduction on the pretrain branch.
    loss_mean, _ = reg_loss(pred, target_pre, reduction="mean", pretrain=True)
    loss_mean = jax.block_until_ready(loss_mean)
    ref_mean = _reference_reg_loss(pred, target_pre, reduction="mean",
                                   pretrain=True)
    assert jnp.allclose(loss_mean, ref_mean, rtol=1e-5, atol=1e-5), (loss_mean, ref_mean)

    print("KERNEL_OK")
</pallas_src>

<mosaic_0001>
module attributes {stable_mosaic.version = 11 : i64} {
  func.func @kernel(%arg0: i32, %arg1: memref<8x128xf32, #tpu.memory_space<vmem>>, %arg2: memref<1x2xf32, #tpu.memory_space<smem>>, %arg3: memref<1x2xf32, #tpu.memory_space<smem>>) attributes {dimension_semantics = [#tpu.dimension_semantics<arbitrary>], iteration_bounds = array<i64: 1>, scalar_prefetch = 0 : i64, scratch_operands = 1 : i64, tpu.core_type = #tpu.core_type<tc>, window_params = [{transform_indices = @transform_0, window_bounds = array<i64: 8, 128>}, {transform_indices = @transform_1, window_bounds = array<i64: 1, 2>}]} {
    %c0_i32 = arith.constant 0 : i32
    %0 = arith.cmpi eq, %arg0, %c0_i32 : i32
    %1 = arith.extui %0 : i1 to i32
    %c0_i32_0 = arith.constant 0 : i32
    %2 = arith.cmpi ne, %1, %c0_i32_0 : i32
    scf.if %2 {
      %cst_18 = arith.constant 0.000000e+00 : f32
      %c0_19 = arith.constant 0 : index
      %c0_20 = arith.constant 0 : index
      %54 = memref.load %arg3[%c0_19, %c0_20] : memref<1x2xf32, #tpu.memory_space<smem>>
      memref.store %cst_18, %arg3[%c0_19, %c0_20] : memref<1x2xf32, #tpu.memory_space<smem>>
      %cst_21 = arith.constant 0.000000e+00 : f32
      %c0_22 = arith.constant 0 : index
      %c1_23 = arith.constant 1 : index
      %55 = memref.load %arg3[%c0_22, %c1_23] : memref<1x2xf32, #tpu.memory_space<smem>>
      memref.store %cst_21, %arg3[%c0_22, %c1_23] : memref<1x2xf32, #tpu.memory_space<smem>>
    } else {
    }
    %c0 = arith.constant 0 : index
    %c0_1 = arith.constant 0 : index
    %3 = vector.load %arg1[%c0, %c0_1] : memref<8x128xf32, #tpu.memory_space<vmem>>, vector<8x128xf32>
    %4 = vector.extract_strided_slice %3 {offsets = [0, 0], sizes = [4, 128], strides = [1, 1]} : vector<8x128xf32> to vector<4x128xf32>
    %5 = math.absf %4 : vector<4x128xf32>
    %6 = vector.extract_strided_slice %3 {offsets = [4, 0], sizes = [4, 128], strides = [1, 1]} : vector<8x128xf32> to vector<4x128xf32>
    %7 = vector.extract_strided_slice %6 {offsets = [0, 0], sizes = [1, 128], strides = [1, 1]} : vector<4x128xf32> to vector<1x128xf32>
    %cst = arith.constant 2.000000e+00 : f32
    %8 = vector.broadcast %cst : f32 to vector<1x128xf32>
    %9 = arith.cmpf one, %7, %8 : vector<1x128xf32>
    %10 = vector.extract_strided_slice %5 {offsets = [0, 0], sizes = [2, 128], strides = [1, 1]} : vector<4x128xf32> to vector<2x128xf32>
    %11 = vector.extract_strided_slice %6 {offsets = [0, 0], sizes = [2, 128], strides = [1, 1]} : vector<4x128xf32> to vector<2x128xf32>
    %12 = arith.subf %10, %11 : vector<2x128xf32>
    %13 = arith.mulf %12, %12 : vector<2x128xf32>
    %cst_2 = arith.constant 0.000000e+00 : f32
    %14 = vector.shape_cast %9 : vector<1x128xi1> to vector<1x128xi1>
    %15 = vector.broadcast %14 : vector<1x128xi1> to vector<2x128xi1>
    %16 = vector.broadcast %cst_2 : f32 to vector<2x128xf32>
    %17 = arith.select %15, %13, %16 : vector<2x128xi1>, vector<2x128xf32>
    %18 = vector.extract_strided_slice %5 {offsets = [2, 0], sizes = [2, 128], strides = [1, 1]} : vector<4x128xf32> to vector<2x128xf32>
    %19 = math.sqrt %18 : vector<2x128xf32>
    %20 = vector.extract_strided_slice %6 {offsets = [2, 0], sizes = [2, 128], strides = [1, 1]} : vector<4x128xf32> to vector<2x128xf32>
    %21 = math.sqrt %20 : vector<2x128xf32>
    %22 = arith.subf %19, %21 : vector<2x128xf32>
    %23 = arith.mulf %22, %22 : vector<2x128xf32>
    %cst_3 = arith.constant 0.000000e+00 : f32
    %24 = vector.shape_cast %9 : vector<1x128xi1> to vector<1x128xi1>
    %25 = vector.broadcast %24 : vector<1x128xi1> to vector<2x128xi1>
    %26 = vector.broadcast %cst_3 : f32 to vector<2x128xf32>
    %27 = arith.select %25, %23, %26 : vector<2x128xi1>, vector<2x128xf32>
    %28 = vector.shape_cast %17 : vector<2x128xf32> to vector<1x2x128xf32>
    %cst_4 = arith.constant dense<0.000000e+00> : vector<1xf32>
    %29 = vector.multi_reduction <add>, %28, %cst_4 [1, 2] : vector<1x2x128xf32> to vector<1xf32>
    %30 = vector.shape_cast %29 : vector<1xf32> to vector<1x1x1xf32>
    %31 = vector.extract %30[0, 0, 0] : f32 from vector<1x1x1xf32>
    %cst_5 = arith.constant 1.000000e+00 : f32
    %32 = arith.mulf %cst_5, %31 : f32
    %33 = vector.shape_cast %27 : vector<2x128xf32> to vector<1x2x128xf32>
    %cst_6 = arith.constant dense<0.000000e+00> : vector<1xf32>
    %34 = vector.multi_reduction <add>, %33, %cst_6 [1, 2] : vector<1x2x128xf32> to vector<1xf32>
    %35 = vector.shape_cast %34 : vector<1xf32> to vector<1x1x1xf32>
    %36 = vector.extract %35[0, 0, 0] : f32 from vector<1x1x1xf32>
    %cst_7 = arith.constant 5.000000e-01 : f32
    %37 = arith.mulf %cst_7, %36 : f32
    %38 = arith.addf %32, %37 : f32
    %39 = arith.extui %9 : vector<1x128xi1> to vector<1x128xi32>
    %40 = arith.sitofp %39 : vector<1x128xi32> to vector<1x128xf32>
    %41 = vector.shape_cast %40 : vector<1x128xf32> to vector<1x1x128xf32>
    %cst_8 = arith.constant dense<0.000000e+00> : vector<1xf32>
    %42 = vector.multi_reduction <add>, %41, %cst_8 [1, 2] : vector<1x1x128xf32> to vector<1xf32>
    %43 = vector.shape_cast %42 : vector<1xf32> to vector<1x1x1xf32>
    %44 = vector.extract %43[0, 0, 0] : f32 from vector<1x1x1xf32>
    %c0_9 = arith.constant 0 : index
    %c0_10 = arith.constant 0 : index
    %45 = memref.load %arg3[%c0_9, %c0_10] : memref<1x2xf32, #tpu.memory_space<smem>>
    %46 = arith.addf %45, %38 : f32
    %c0_11 = arith.constant 0 : index
    %c0_12 = arith.constant 0 : index
    %47 = memref.load %arg3[%c0_11, %c0_12] : memref<1x2xf32, #tpu.memory_space<smem>>
    memref.store %46, %arg3[%c0_11, %c0_12] : memref<1x2xf32, #tpu.memory_space<smem>>
    %c0_13 = arith.constant 0 : index
    %c1 = arith.constant 1 : index
    %48 = memref.load %arg3[%c0_13, %c1] : memref<1x2xf32, #tpu.memory_space<smem>>
    %49 = arith.addf %48, %44 : f32
    %c0_14 = arith.constant 0 : index
    %c1_15 = arith.constant 1 : index
    %50 = memref.load %arg3[%c0_14, %c1_15] : memref<1x2xf32, #tpu.memory_space<smem>>
    memref.store %49, %arg3[%c0_14, %c1_15] : memref<1x2xf32, #tpu.memory_space<smem>>
    %c0_i32_16 = arith.constant 0 : i32
    %51 = arith.cmpi eq, %arg0, %c0_i32_16 : i32
    %52 = arith.extui %51 : i1 to i32
    %c0_i32_17 = arith.constant 0 : i32
    %53 = arith.cmpi ne, %52, %c0_i32_17 : i32
    scf.if %53 {
      %c0_18 = arith.constant 0 : index
      %c0_19 = arith.constant 0 : index
      %54 = memref.load %arg3[%c0_18, %c0_19] : memref<1x2xf32, #tpu.memory_space<smem>>
      %c0_20 = arith.constant 0 : index
      %c0_21 = arith.constant 0 : index
      %55 = memref.load %arg2[%c0_20, %c0_21] : memref<1x2xf32, #tpu.memory_space<smem>>
      memref.store %54, %arg2[%c0_20, %c0_21] : memref<1x2xf32, #tpu.memory_space<smem>>
      %c0_22 = arith.constant 0 : index
      %c1_23 = arith.constant 1 : index
      %56 = memref.load %arg3[%c0_22, %c1_23] : memref<1x2xf32, #tpu.memory_space<smem>>
      %c0_24 = arith.constant 0 : index
      %c1_25 = arith.constant 1 : index
      %57 = memref.load %arg2[%c0_24, %c1_25] : memref<1x2xf32, #tpu.memory_space<smem>>
      memref.store %56, %arg2[%c0_24, %c1_25] : memref<1x2xf32, #tpu.memory_space<smem>>
    } else {
    }
    return
  }
  func.func @transform_0(%arg0: i32) -> (i32, i32) {
    %c0_i32 = arith.constant 0 : i32
    %c0_i32_0 = arith.constant 0 : i32
    return %c0_i32, %arg0 : i32, i32
  }
  func.func @transform_1(%arg0: i32) -> (i32, i32) {
    %c0_i32 = arith.constant 0 : i32
    %c0_i32_0 = arith.constant 0 : i32
    %c0_i32_1 = arith.constant 0 : i32
    return %c0_i32, %c0_i32_0 : i32, i32
  }
}

</mosaic_0001>

<llo_original>
// kernel: tpu_custom_call.1
$region0: #{tpu_custom_call.1}
  #allocation0 [shape = 'u32[]', space=smem, size = 0x4, offset = 0x4, fixed_abs, tag = 'smem constant byte address 0x4 - core index']
  #allocation1 [shape = 'u32[144,128]{1,0:T(1,128)}', space=vmem, size = 0x12000, scoped, tag = 'internal scratch']
  #allocation2 [shape = 'f32[1,2]{1,0:T(1,128)}', space=smem, size = 0x200, scoped, tag = 'scratch operand']
  %s0 = inlined_call_operand.hbm [shape: f32[8,128], index: 0, kind: input, shape index: {}]
  %s1 = inlined_call_operand.hbm [shape: f32[1,2], index: 1, kind: output, shape index: {}]
  %s2 = sld [smem:[#allocation0]]
  $region26: #{tpu_custom_call.1} parent=0
    _
  %s4 = ssub.s32 1, %s2
  %s5 = scalar_select 0, %s4, %s2
  $region1: #{tpu_custom_call.1} parent=0
    #allocation3 [shape = 'u8[4096]{0}', space=vmem, size = 0x1000, scoped, tag = 'input window, operand 0, single buffered']
    #allocation4 [shape = 's32[1]{0}', space=sflag, size = 0x4, scoped, tag = 'scoped memory for tpu_custom_call.1']
    #allocation5 [shape = 's32[1]{0}', space=sflag, size = 0x4, scoped, tag = 'scoped memory for tpu_custom_call.1']
    #allocation6 [shape = 'u8[512]{0}', space=smem, size = 0x200, scoped, tag = 'output window, operand 0, single buffered']
    %6 = vsyncpa [#allocation4], 0
    %7 = vsyncpa [#allocation5], 0
    // Predicated region
    $region2: #{tpu_custom_call.1} parent=1 // pred_check
      _
    $region3: #{tpu_custom_call.1} parent=1 // pred_check_branch
      %9 = sbr.rel (0) target = $region5
    $region4: #{tpu_custom_call.1} parent=1 // pred_region
      %s11 = ssub.s32 128, 128
      %12 = vsyncadd [#allocation4], %s11
      %s14 = sshll.u32 [#allocation3], 4
      %s15 = int_to_ptr.vmem [resolvable:$true] %s14
      %17 = dma.hbm_to_vmem [thread:$0]  %s0, 128, %s15, [#allocation4]
    $region5: #{tpu_custom_call.1} parent=1 // pred_fallthru
      _
    // Predicated region
    $region6: #{tpu_custom_call.1} parent=1 // pred_check
      _
    $region7: #{tpu_custom_call.1} parent=1 // pred_check_branch
      %19 = sbr.rel (0) target = $region9
    $region8: #{tpu_custom_call.1} parent=1 // pred_region
      %20 = dma.done [#allocation4], 128
    $region9: #{tpu_custom_call.1} parent=1 // pred_fallthru
      _
    %p21 = scmp.eq.s32.totalorder 0, 0
    // Predicated region
    $region10: #{tpu_custom_call.1} parent=1 // pred_check
      %p22 = pneg %p21
    $region11: #{tpu_custom_call.1} parent=1 // pred_check_branch
      %24 = sbr.rel (%p22) target = $region13
    $region12: #{tpu_custom_call.1} parent=1 // pred_region
      %s25 = scalar_lea.smem [#allocation2], 0
      %26 = sst [smem:[%s25]] 0.0
      %s27 = scalar_lea.smem [#allocation2], 1
      %28 = sst [smem:[%s27]] 0.0
    $region13: #{tpu_custom_call.1} parent=1 // pred_fallthru
      _
    %v29 = vld [vmem:[#allocation3] sm:$0xff]
    %v30 = vand.u32 2147483647, %v29
    %vm31 = vcmp.ne.f32.partialorder %v29, 2.0
    %v33 = vrot.slane %v29, 4
    %v35 = vsub.f32 %v30, %v33
    %v36 = vmul.f32 %v35, %v35
    %v37 = vsel %vm31, 1, 0
    %v38 = vlaneseq
    %v39 = vshrl.u32 %v38, 7
    %v40 = vsub.s32 4, %v39
    %v41 = vrot.slane %v37, %v40
    %vm42 = vcmp.eq.s32.totalorder %v41, 1
    %v43 = vsel %vm42, %v36, 0.0
    %v44 = vrsqrt.pop %v30
    %v45 = vmul.f32 %v30, %v44
    %vm46 = vcmp.eq.f32.partialorder %v30, inf
    %v47 = vsel %vm46, %v30, %v45
    %vm48 = vcmp.eq.f32.partialorder %v30, 0.0
    %v49 = vand.u32 %v30, 2147483648
    %v50 = vsel %vm48, %v49, %v47
    %v51 = vrsqrt.pop %v29
    %v52 = vmul.f32 %v29, %v51
    %vm53 = vcmp.eq.f32.partialorder %v29, inf
    %v54 = vsel %vm53, %v29, %v52
    %vm55 = vcmp.eq.f32.partialorder %v29, 0.0
    %v56 = vand.u32 %v29, 2147483648
    %v57 = vsel %vm55, %v56, %v54
    %v59 = vrot.slane %v57, 4
    %v61 = vsub.f32 %v50, %v59
    %v62 = vmul.f32 %v61, %v61
    %v63 = vsel %vm42, %v62, 0.0
    %vm64 = vcmask 1041408
    %v65 = vsel %vm64, %v43, 0.0
    %66 = vadd.xlane.f32.xlu0 %v65
    %v67 = vpop.xlane.xlu0 %66
    %v68 = vrot.slane %v67, 4
    %v69 = vadd.f32 %v67, %v68
    %v70 = vrot.slane %v69, 2
    %v71 = vadd.f32 %v69, %v70
    %v72 = vrot.slane %v71, 1
    %v73 = vadd.f32 %v71, %v72
    %s74 = vtos %v73
    %v76 = vrot.slane %v63, 2
    %v78 = vsel %vm64, %v76, 0.0
    %79 = vadd.xlane.f32.xlu0 %v78
    %v80 = vpop.xlane.xlu0 %79
    %v81 = vrot.slane %v80, 4
    %v82 = vadd.f32 %v80, %v81
    %v83 = vrot.slane %v82, 2
    %v84 = vadd.f32 %v82, %v83
    %v85 = vrot.slane %v84, 1
    %v86 = vadd.f32 %v84, %v85
    %s87 = vtos %v86
    %s88 = smul.f32 %s87, 0.5
    %s89 = sadd.f32 %s74, %s88
    %v90 = vcvt.s32.f32 %v37
    %v92 = vrot.slane %v90, 4
    %vm94 = vcmask 1040384
    %v95 = vsel %vm94, %v92, 0.0
    %96 = vadd.xlane.f32.xlu0 %v95
    %v97 = vpop.xlane.xlu0 %96
    %v98 = vrot.slane %v97, 4
    %v99 = vadd.f32 %v97, %v98
    %v100 = vrot.slane %v99, 2
    %v101 = vadd.f32 %v99, %v100
    %v102 = vrot.slane %v101, 1
    %v103 = vadd.f32 %v101, %v102
    %s104 = vtos %v103
    %s105 = sld [smem:[#allocation2]]
    %s106 = sadd.f32 %s105, %s89
    %s107 = scalar_lea.smem [#allocation2], 0
    %108 = sst [smem:[%s107]] %s106
    %s109 = sld [smem:[#allocation2 + $0x1]]
    %s110 = sadd.f32 %s109, %s104
    %s111 = scalar_lea.smem [#allocation2], 1
    %112 = sst [smem:[%s111]] %s110
    // Predicated region
    $region14: #{tpu_custom_call.1} parent=1 // pred_check
      %p113 = pneg %p21
    $region15: #{tpu_custom_call.1} parent=1 // pred_check_branch
      %115 = sbr.rel (%p113) target = $region17
    $region16: #{tpu_custom_call.1} parent=1 // pred_region
      %s116 = sld [smem:[#allocation2]]
      %s117 = scalar_lea.smem [#allocation6], 0
      %118 = sst [smem:[%s117]] %s116
      %s119 = sld [smem:[#allocation2 + $0x1]]
      %s120 = scalar_lea.smem [#allocation6], 1
      %121 = sst [smem:[%s120]] %s119
    $region17: #{tpu_custom_call.1} parent=1 // pred_fallthru
      _
    // Predicated region
    $region18: #{tpu_custom_call.1} parent=1 // pred_check
      _
    $region19: #{tpu_custom_call.1} parent=1 // pred_check_branch
      %123 = sbr.rel (0) target = $region21
    $region20: #{tpu_custom_call.1} parent=1 // pred_region
      %s125 = ssub.s32 16, 16
      %126 = vsyncadd [#allocation5], %s125
      %129 = dma.smem_to_hbm [#allocation6], 16, %s1, [#allocation5]
    $region21: #{tpu_custom_call.1} parent=1 // pred_fallthru
      _
    // Predicated region
    $region22: #{tpu_custom_call.1} parent=1 // pred_check
      _
    $region23: #{tpu_custom_call.1} parent=1 // pred_check_branch
      %131 = sbr.rel (0) target = $region25
    $region24: #{tpu_custom_call.1} parent=1 // pred_region
      %132 = dma.done [#allocation5], 16
    $region25: #{tpu_custom_call.1} parent=1 // pred_fallthru
      _
    %133 = sfence
    %134 = vsyncpa [#allocation4], 1
    %135 = vsyncpa [#allocation5], 1

</llo_original>
